<compile_context>
chip_gen: v7x
topology: tpu7x:2x2x1
jax: 0.10.0
libtpu: 0.0.40
codegen_flags: <defaults>
</compile_context>

<pallas_src>
import jax
import jax.numpy as jnp
from jax.experimental import pallas as pl
from jax.experimental.pallas import tpu as pltpu

LANES = 128  # lane-dense width for the logabsdet slab


# ---------------------------------------------------------------------------
# Pallas kernel: MADE conditioner + elementwise affine forward
# ---------------------------------------------------------------------------
def maf_forward_kernel(x_ref, w1t_ref, b1_ref, wh_ref, bh_ref, out_ref, lad_ref):
    x = x_ref[...]                                     # [TB, D]  f32 (kept for epilogue)
    xb = x.astype(jnp.bfloat16)

    # hidden layer of the (masked) conditioner:  h = relu(x @ W1m^T + b1)
    h = jnp.dot(xb, w1t_ref[...], preferred_element_type=jnp.float32)   # [TB, H] f32
    h = jnp.maximum(h + b1_ref[...], 0.0)

    # merged output heads (masks already folded; scale cols [:D], shift cols [D:])
    y = jnp.dot(h.astype(jnp.bfloat16), wh_ref[...],
                preferred_element_type=jnp.float32) + bh_ref[...]       # [TB, 2D] f32

    D = x.shape[-1]
    s_unc = y[:, :D]
    shift = y[:, D:]

    # _elementwise_forward (affine), all in f32
    scale = jax.nn.sigmoid(s_unc + 2.0) + 1e-3          # [TB, D]
    out_ref[...] = scale * x + shift

    # lane-dense logabsdet: broadcast the row-sum across 128 lanes (unmasked store)
    lad = jnp.sum(jnp.log(scale), axis=-1, keepdims=True)               # [TB, 1]
    lad_ref[...] = jnp.broadcast_to(lad, lad_ref.shape)                 # [TB, 128]


# ---------------------------------------------------------------------------
# Static glue: MADE masks folded into weights, heads merged, bf16 cast
# ---------------------------------------------------------------------------
def make_made_params(key, num_features, hidden):
    k1, k2, k3, k4, k5, k6 = jax.random.split(key, 6)
    D, H = num_features, hidden

    # deterministic small init (synthetic weights, no checkpoint)
    w1 = jax.random.normal(k1, (H, D), jnp.float32) * 0.1   # hidden layer weight
    b1 = jax.random.normal(k2, (1, H), jnp.float32) * 0.1
    ws = jax.random.normal(k3, (D, H), jnp.float32) * 0.1   # unconstrained-scale head
    bs = jax.random.normal(k4, (1, D), jnp.float32) * 0.1
    wt = jax.random.normal(k5, (D, H), jnp.float32) * 0.1   # shift head
    bt = jax.random.normal(k6, (1, D), jnp.float32) * 0.1

    # MADE degrees and masks (standard construction)
    deg_in = jnp.arange(1, D + 1)                               # [D]
    deg_h = (jnp.arange(H) % max(D - 1, 1)) + 1                 # [H]
    mask1 = (deg_h[:, None] >= deg_in[None, :]).astype(jnp.float32)    # [H, D]
    mask_out = (deg_in[:, None] > deg_h[None, :]).astype(jnp.float32)  # [D, H]

    # fold masks, pre-transpose, merge the two heads, cast matmul operands to bf16
    w1t = (w1 * mask1).T.astype(jnp.bfloat16)                            # [D, H]
    wh = jnp.concatenate([(ws * mask_out).T, (wt * mask_out).T], axis=1) # [H, 2D]
    wh = wh.astype(jnp.bfloat16)
    bh = jnp.concatenate([bs, bt], axis=1)                               # [1, 2D] f32
    return w1t, b1, wh, bh


# ---------------------------------------------------------------------------
# Wrapper: Pallas hot path
# ---------------------------------------------------------------------------
def autoregressive_transform_forward(x, params, *, tile_b=128):
    B, D = x.shape
    w1t, b1, wh, bh = params
    H = w1t.shape[1]

    # pad batch to a multiple of tile_b (padded rows are discarded after)
    pad_b = (-B) % tile_b
    xp = jnp.pad(x, ((0, pad_b), (0, 0))) if pad_b else x
    Bp = B + pad_b
    grid = (Bp // tile_b,)

    full = lambda shape: pl.BlockSpec(shape, lambda i: (0,) * len(shape))

    cost = pl.CostEstimate(
        flops=2 * Bp * D * H + 2 * Bp * H * (2 * D),
        transcendentals=2 * Bp * D,                       # sigmoid + log per element
        bytes_accessed=(Bp * D * 4 * 2 + Bp * LANES * 4   # x, out, lad
                        + (D * H + H * 2 * D) * 2 + (H + 2 * D) * 4),  # weights/biases
    )

    # NOTE: weight specs have constant index maps, so they stay VMEM-resident
    # across grid steps (tiny footprint here; for very large flows use bf16 /
    # Buffered(1) / an H-tiling axis to stay under v7x's 64 MiB VMEM).
    outputs, lad_slab = pl.pallas_call(
        maf_forward_kernel,
        out_shape=(
            jax.ShapeDtypeStruct((Bp, D), jnp.float32),
            jax.ShapeDtypeStruct((Bp, LANES), jnp.float32),
        ),
        grid_spec=pltpu.PrefetchScalarGridSpec(
            num_scalar_prefetch=0,
            grid=grid,
            in_specs=[
                pl.BlockSpec((tile_b, D), lambda i: (i, 0)),   # x (f32)
                full((D, H)),                                  # W1^T  (masked, bf16)
                full((1, H)),                                  # b1    (f32)
                full((H, 2 * D)),                              # [Ws^T || Wt^T] (bf16)
                full((1, 2 * D)),                              # [bs || bt]     (f32)
            ],
            out_specs=[
                pl.BlockSpec((tile_b, D), lambda i: (i, 0)),
                pl.BlockSpec((tile_b, LANES), lambda i: (i, 0)),
            ],
        ),
        compiler_params=pltpu.CompilerParams(
            dimension_semantics=("parallel",),
            vmem_limit_bytes=64 * 1024 * 1024,
        ),
        cost_estimate=cost,
    )(xp, w1t, b1, wh, bh)

    return outputs[:B], lad_slab[:B, 0]


# plain-JAX reference (same bf16 matmul operands, f32 accumulation/epilogue)
def reference_forward(x, params):
    w1t, b1, wh, bh = params
    D = x.shape[-1]
    h = jnp.dot(x.astype(jnp.bfloat16), w1t, preferred_element_type=jnp.float32) + b1
    h = jnp.maximum(h, 0.0)
    y = jnp.dot(h.astype(jnp.bfloat16), wh, preferred_element_type=jnp.float32) + bh
    s_unc, shift = y[:, :D], y[:, D:]
    scale = jax.nn.sigmoid(s_unc + 2.0) + 1e-3
    return scale * x + shift, jnp.sum(jnp.log(scale), axis=-1)


if __name__ == "__main__":
    # small but MXU-friendly shapes: 2 grid steps of 128 rows, D/H lane-aligned
    B, D, H = 256, 64, 128
    key = jax.random.PRNGKey(0)
    kx, kp = jax.random.split(key)

    x = jax.random.normal(kx, (B, D), jnp.float32)
    params = make_made_params(kp, D, H)

    out, lad = autoregressive_transform_forward(x, params, tile_b=128)
    out = jax.block_until_ready(out)
    lad = jax.block_until_ready(lad)

    ref_out, ref_lad = reference_forward(x, params)
    assert out.shape == (B, D) and lad.shape == (B,)
    assert jnp.allclose(out, ref_out, atol=2e-3, rtol=2e-3), float(
        jnp.max(jnp.abs(out - ref_out)))
    assert jnp.allclose(lad, ref_lad, atol=2e-3, rtol=2e-3), float(
        jnp.max(jnp.abs(lad - ref_lad)))

    # TODO(synk): `reverse` is an inherently sequential D-step loop (one feature
    # at a time through the conditioner) and is not implemented as a kernel here.
    print("KERNEL_OK")
</pallas_src>

<mosaic_0001>
module attributes {stable_mosaic.version = 11 : i64} {
  func.func @maf_forward_kernel(%arg0: i32, %arg1: memref<128x64xf32, #tpu.memory_space<vmem>>, %arg2: memref<64x128xbf16, #tpu.memory_space<vmem>>, %arg3: memref<1x128xf32, #tpu.memory_space<vmem>>, %arg4: memref<128x128xbf16, #tpu.memory_space<vmem>>, %arg5: memref<1x128xf32, #tpu.memory_space<vmem>>, %arg6: memref<128x64xf32, #tpu.memory_space<vmem>>, %arg7: memref<128x128xf32, #tpu.memory_space<vmem>>) attributes {dimension_semantics = [#tpu.dimension_semantics<parallel>], iteration_bounds = array<i64: 2>, scalar_prefetch = 0 : i64, scratch_operands = 0 : i64, tpu.core_type = #tpu.core_type<tc>, window_params = [{transform_indices = @transform_0, window_bounds = array<i64: 128, 64>}, {pipeline_mode = #tpu.pipeline_mode<synchronous>, transform_indices = @transform_1, window_bounds = array<i64: 64, 128>}, {pipeline_mode = #tpu.pipeline_mode<synchronous>, transform_indices = @transform_2, window_bounds = array<i64: 1, 128>}, {pipeline_mode = #tpu.pipeline_mode<synchronous>, transform_indices = @transform_3, window_bounds = array<i64: 128, 128>}, {pipeline_mode = #tpu.pipeline_mode<synchronous>, transform_indices = @transform_4, window_bounds = array<i64: 1, 128>}, {transform_indices = @transform_5, window_bounds = array<i64: 128, 64>}, {transform_indices = @transform_6, window_bounds = array<i64: 128, 128>}]} {
    %c0 = arith.constant 0 : index
    %c0_0 = arith.constant 0 : index
    %0 = vector.load %arg1[%c0, %c0_0] : memref<128x64xf32, #tpu.memory_space<vmem>>, vector<128x64xf32>
    %1 = arith.truncf %0 : vector<128x64xf32> to vector<128x64xbf16>
    %c0_1 = arith.constant 0 : index
    %c0_2 = arith.constant 0 : index
    %2 = vector.load %arg2[%c0_1, %c0_2] : memref<64x128xbf16, #tpu.memory_space<vmem>>, vector<64x128xbf16>
    %cst = arith.constant dense<0.000000e+00> : vector<128x128xf32>
    %3 = tpu.matmul %1, %2, %cst {dimension_numbers = #tpu.dot_dimension_numbers<[1], [0], [0], [1], [0, 0, 1, 1], [], []>} : vector<128x64xbf16>, vector<64x128xbf16>, vector<128x128xf32> -> vector<128x128xf32>
    %c0_3 = arith.constant 0 : index
    %c0_4 = arith.constant 0 : index
    %4 = vector.load %arg3[%c0_3, %c0_4] : memref<1x128xf32, #tpu.memory_space<vmem>>, vector<1x128xf32>
    %5 = vector.broadcast %4 : vector<1x128xf32> to vector<128x128xf32>
    %6 = arith.addf %3, %5 : vector<128x128xf32>
    %cst_5 = arith.constant 0.000000e+00 : f32
    %7 = vector.broadcast %cst_5 : f32 to vector<128x128xf32>
    %8 = arith.maximumf %6, %7 : vector<128x128xf32>
    %9 = arith.truncf %8 : vector<128x128xf32> to vector<128x128xbf16>
    %c0_6 = arith.constant 0 : index
    %c0_7 = arith.constant 0 : index
    %10 = vector.load %arg4[%c0_6, %c0_7] : memref<128x128xbf16, #tpu.memory_space<vmem>>, vector<128x128xbf16>
    %cst_8 = arith.constant dense<0.000000e+00> : vector<128x128xf32>
    %11 = tpu.matmul %9, %10, %cst_8 {dimension_numbers = #tpu.dot_dimension_numbers<[1], [0], [0], [1], [0, 0, 1, 1], [], []>} : vector<128x128xbf16>, vector<128x128xbf16>, vector<128x128xf32> -> vector<128x128xf32>
    %c0_9 = arith.constant 0 : index
    %c0_10 = arith.constant 0 : index
    %12 = vector.load %arg5[%c0_9, %c0_10] : memref<1x128xf32, #tpu.memory_space<vmem>>, vector<1x128xf32>
    %13 = vector.broadcast %12 : vector<1x128xf32> to vector<128x128xf32>
    %14 = arith.addf %11, %13 : vector<128x128xf32>
    %15 = vector.extract_strided_slice %14 {offsets = [0, 0], sizes = [128, 64], strides = [1, 1]} : vector<128x128xf32> to vector<128x64xf32>
    %16 = vector.extract_strided_slice %14 {offsets = [0, 64], sizes = [128, 64], strides = [1, 1]} : vector<128x128xf32> to vector<128x64xf32>
    %cst_11 = arith.constant 2.000000e+00 : f32
    %17 = vector.broadcast %cst_11 : f32 to vector<128x64xf32>
    %18 = arith.addf %15, %17 : vector<128x64xf32>
    %19 = arith.negf %18 : vector<128x64xf32>
    %20 = math.exp %19 : vector<128x64xf32>
    %cst_12 = arith.constant 1.000000e+00 : f32
    %21 = vector.broadcast %cst_12 : f32 to vector<128x64xf32>
    %22 = arith.addf %21, %20 : vector<128x64xf32>
    %23 = arith.divf %21, %22 : vector<128x64xf32>
    %cst_13 = arith.constant 1.000000e-03 : f32
    %24 = vector.broadcast %cst_13 : f32 to vector<128x64xf32>
    %25 = arith.addf %23, %24 : vector<128x64xf32>
    %26 = arith.mulf %25, %0 : vector<128x64xf32>
    %27 = arith.addf %26, %16 : vector<128x64xf32>
    %c0_14 = arith.constant 0 : index
    %c0_15 = arith.constant 0 : index
    %28 = vector.load %arg6[%c0_14, %c0_15] : memref<128x64xf32, #tpu.memory_space<vmem>>, vector<128x64xf32>
    tpu.vector_store %arg6[%c0_14, %c0_15], %27 {strides = array<i32>} : memref<128x64xf32, #tpu.memory_space<vmem>>, vector<128x64xf32>,
    %29 = math.log %25 : vector<128x64xf32>
    %cst_16 = arith.constant dense<0.000000e+00> : vector<128xf32>
    %30 = vector.multi_reduction <add>, %29, %cst_16 [1] : vector<128x64xf32> to vector<128xf32>
    %31 = vector.shape_cast %30 : vector<128xf32> to vector<128x1xf32>
    %32 = vector.shape_cast %31 : vector<128x1xf32> to vector<128x1xf32>
    %33 = vector.broadcast %32 : vector<128x1xf32> to vector<128x128xf32>
    %c0_17 = arith.constant 0 : index
    %c0_18 = arith.constant 0 : index
    %34 = vector.load %arg7[%c0_17, %c0_18] : memref<128x128xf32, #tpu.memory_space<vmem>>, vector<128x128xf32>
    tpu.vector_store %arg7[%c0_17, %c0_18], %33 {strides = array<i32>} : memref<128x128xf32, #tpu.memory_space<vmem>>, vector<128x128xf32>,
    return
  }
  func.func @transform_0(%arg0: i32) -> (i32, i32) {
    %c0_i32 = arith.constant 0 : i32
    %c0_i32_0 = arith.constant 0 : i32
    return %arg0, %c0_i32 : i32, i32
  }
  func.func @transform_1(%arg0: i32) -> (i32, i32) {
    %c0_i32 = arith.constant 0 : i32
    %c0_i32_0 = arith.constant 0 : i32
    %c0_i32_1 = arith.constant 0 : i32
    return %c0_i32, %c0_i32_0 : i32, i32
  }
  func.func @transform_2(%arg0: i32) -> (i32, i32) {
    %c0_i32 = arith.constant 0 : i32
    %c0_i32_0 = arith.constant 0 : i32
    %c0_i32_1 = arith.constant 0 : i32
    return %c0_i32, %c0_i32_0 : i32, i32
  }
  func.func @transform_3(%arg0: i32) -> (i32, i32) {
    %c0_i32 = arith.constant 0 : i32
    %c0_i32_0 = arith.constant 0 : i32
    %c0_i32_1 = arith.constant 0 : i32
    return %c0_i32, %c0_i32_0 : i32, i32
  }
  func.func @transform_4(%arg0: i32) -> (i32, i32) {
    %c0_i32 = arith.constant 0 : i32
    %c0_i32_0 = arith.constant 0 : i32
    %c0_i32_1 = arith.constant 0 : i32
    return %c0_i32, %c0_i32_0 : i32, i32
  }
  func.func @transform_5(%arg0: i32) -> (i32, i32) {
    %c0_i32 = arith.constant 0 : i32
    %c0_i32_0 = arith.constant 0 : i32
    return %arg0, %c0_i32 : i32, i32
  }
  func.func @transform_6(%arg0: i32) -> (i32, i32) {
    %c0_i32 = arith.constant 0 : i32
    %c0_i32_0 = arith.constant 0 : i32
    return %arg0, %c0_i32 : i32, i32
  }
}

</mosaic_0001>

<llo_original>
// kernel: tpu_custom_call.1
$region0: #{tpu_custom_call.1}
  #allocation0 [shape = 'u32[]', space=smem, size = 0x4, offset = 0x4, fixed_abs, tag = 'smem constant byte address 0x4 - core index']
  #allocation1 [shape = 'u32[144,128]{1,0:T(1,128)}', space=vmem, size = 0x12000, scoped, tag = 'internal scratch']
  %s0 = inlined_call_operand.hbm [shape: f32[256,64], index: 0, kind: input, shape index: {}]
  %s1 = inlined_call_operand.hbm [shape: bf16[64,128], index: 1, kind: input, shape index: {}]
  %s2 = inlined_call_operand.hbm [shape: f32[1,128], index: 2, kind: input, shape index: {}]
  %s3 = inlined_call_operand.hbm [shape: bf16[128,128], index: 3, kind: input, shape index: {}]
  %s4 = inlined_call_operand.hbm [shape: f32[1,128], index: 4, kind: input, shape index: {}]
  %s5 = inlined_call_operand.hbm [shape: f32[256,64], index: 5, kind: output, shape index: {0}]
  %s6 = inlined_call_operand.hbm [shape: f32[256,128], index: 6, kind: output, shape index: {1}]
  %7 = xla_tuple %s5, %s6
  %s8 = sld [smem:[#allocation0]]
  $region81: #{tpu_custom_call.1} parent=0
    _
  %s10 = ssub.s32 1, %s8
  %s11 = scalar_select 0, %s10, %s8
  $region1: #{tpu_custom_call.1} parent=0
    #allocation2 [shape = 'u8[131072]{0}', space=vmem, size = 0x20000, scoped, tag = 'input window, operand 0']
    #allocation3 [shape = 's32[2]{0}', space=sflag, size = 0x8, scoped, tag = 'scoped memory for tpu_custom_call.1']
    #allocation4 [shape = 's32[2]{0}', space=sflag, size = 0x8, scoped, tag = 'scoped memory for tpu_custom_call.1']
    #allocation5 [shape = 'u8[16384]{0}', space=vmem, size = 0x4000, scoped, tag = 'input window, operand 1, single buffered']
    #allocation6 [shape = 's32[1]{0}', space=sflag, size = 0x4, scoped, tag = 'scoped memory for tpu_custom_call.1']
    #allocation7 [shape = 'u8[512]{0}', space=vmem, size = 0x400, scoped, tag = 'input window, operand 2, single buffered']
    #allocation8 [shape = 'u8[32768]{0}', space=vmem, size = 0x8000, scoped, tag = 'input window, operand 3, single buffered']
    #allocation9 [shape = 's32[1]{0}', space=sflag, size = 0x4, scoped, tag = 'scoped memory for tpu_custom_call.1']
    #allocation10 [shape = 'u8[512]{0}', space=vmem, size = 0x400, scoped, tag = 'input window, operand 4, single buffered']
    #allocation11 [shape = 'u8[131072]{0}', space=vmem, size = 0x20000, scoped, tag = 'output window, operand 0']
    #allocation12 [shape = 'u8[131072]{0}', space=vmem, size = 0x20000, scoped, tag = 'output window, operand 1']
    #allocation13 [shape = 's32[2]{0}', space=sflag, size = 0x8, scoped, tag = 'scoped memory for tpu_custom_call.1']
    %12 = vsyncpa [#allocation3], 0
    %s13 = scalar_lea.sflag [#allocation3], 1
    %14 = vsyncpa %s13, 0
    %15 = vsyncpa [#allocation6], 0
    %16 = vsyncpa [#allocation9], 0
    %17 = vsyncpa [#allocation4], 0
    %s18 = scalar_lea.sflag [#allocation4], 1
    %19 = vsyncpa %s18, 0
    %20 = vsyncpa [#allocation13], 0
    %s21 = scalar_lea.sflag [#allocation13], 1
    %22 = vsyncpa %s21, 0
    loop: start=0, step=1, limit=4
    $region2: #{tpu_custom_call.1} parent=1 // loop_pre_header
      _
    $region3: #{tpu_custom_call.1} parent=1 // loop_header
      %s24 = sphi 0, %s28
      %p25 = scmp.ge.s32.totalorder %s24, 4
      %s34 = sphi 0, %s36
      %s37 = sphi 0, %s34
      %s38 = sphi 0, %s37
      %s54 = sphi 0, %s38
      %s58 = sphi 0, %s58
      %s60 = sphi 0, %s58
      %s61 = sphi 0, %s60
      %s75 = sphi 0, %s61
      %s79 = sphi 0, %s79
      %s81 = sphi 0, %s79
      %s82 = sphi 0, %s81
      %s96 = sphi 0, %s82
      %s100 = sphi 0, %s100
      %s102 = sphi 0, %s100
      %s103 = sphi 0, %s102
      %s117 = sphi 0, %s103
      %s121 = sphi 0, %s121
      %s123 = sphi 0, %s121
      %s124 = sphi 0, %s123
      %s138 = sphi 0, %s124
      %s144 = sphi 0, %s146
      %s147 = sphi 0, %s144
      %s148 = sphi 0, %s147
      %s164 = sphi 0, %s148
      %s170 = sphi 0, %s172
      %s173 = sphi 0, %s170
      %s174 = sphi 0, %s173
      %s190 = sphi 0, %s174
    $region4: #{tpu_custom_call.1} parent=1 // loop_header_branch
      %27 = sbr.rel (%p25) target = $region8
    $region5: #{tpu_custom_call.1} parent=1 // loop_body
      %s29 = ssub.s32 %s24, 1
      %s30 = ssub.s32 %s24, 2
      %s31 = sadd.s32 %s24, 1
      %s32 = ssub.s32 %s24, %s31
      %p33 = scmp.eq.s32.totalorder %s32, 0
      %s35 = sadd.s32 %s34, 1
      %s36 = scalar_select %p33, %s34, %s35
      %p39 = pneg %p33
      %p40 = scmp.eq.s32.totalorder %s24, 1
      %p41 = por %p39, %p40
      %p42 = scmp.ne.s32.totalorder %s34, %s37
      %p43 = scmp.eq.s32.totalorder %s24, 0
      %p44 = por %p42, %p43
      %p45 = scmp.ne.s32.totalorder %s34, %s37
      %p46 = scmp.eq.s32.totalorder %s29, 1
      %p47 = por %p45, %p46
      %p48 = scmp.ne.s32.totalorder %s37, %s38
      %p49 = scmp.eq.s32.totalorder %s29, 0
      %p50 = por %p48, %p49
      %p51 = scmp.ne.s32.totalorder %s37, %s38
      %p52 = scmp.eq.s32.totalorder %s30, 1
      %p53 = por %p51, %p52
      %p55 = scmp.ne.s32.totalorder %s38, %s54
      %p56 = scmp.eq.s32.totalorder %s30, 0
      %p57 = por %p55, %p56
      %s59 = sadd.s32 %s58, 1
      %p62 = scmp.eq.s32.totalorder %s24, 1
      %p63 = scmp.ne.s32.totalorder %s58, %s60
      %p64 = scmp.eq.s32.totalorder %s24, 0
      %p65 = por %p63, %p64
      %p66 = scmp.ne.s32.totalorder %s58, %s60
      %p67 = scmp.eq.s32.totalorder %s29, 1
      %p68 = por %p66, %p67
      %p69 = scmp.ne.s32.totalorder %s60, %s61
      %p70 = scmp.eq.s32.totalorder %s29, 0
      %p71 = por %p69, %p70
      %p72 = scmp.ne.s32.totalorder %s60, %s61
      %p73 = scmp.eq.s32.totalorder %s30, 1
      %p74 = por %p72, %p73
      %p76 = scmp.ne.s32.totalorder %s61, %s75
      %p77 = scmp.eq.s32.totalorder %s30, 0
      %p78 = por %p76, %p77
      %s80 = sadd.s32 %s79, 1
      %p83 = scmp.eq.s32.totalorder %s24, 1
      %p84 = scmp.ne.s32.totalorder %s79, %s81
      %p85 = scmp.eq.s32.totalorder %s24, 0
      %p86 = por %p84, %p85
      %p87 = scmp.ne.s32.totalorder %s79, %s81
      %p88 = scmp.eq.s32.totalorder %s29, 1
      %p89 = por %p87, %p88
      %p90 = scmp.ne.s32.totalorder %s81, %s82
      %p91 = scmp.eq.s32.totalorder %s29, 0
      %p92 = por %p90, %p91
      %p93 = scmp.ne.s32.totalorder %s81, %s82
      %p94 = scmp.eq.s32.totalorder %s30, 1
      %p95 = por %p93, %p94
      %p97 = scmp.ne.s32.totalorder %s82, %s96
      %p98 = scmp.eq.s32.totalorder %s30, 0
      %p99 = por %p97, %p98
      %s101 = sadd.s32 %s100, 1
      %p104 = scmp.eq.s32.totalorder %s24, 1
      %p105 = scmp.ne.s32.totalorder %s100, %s102
      %p106 = scmp.eq.s32.totalorder %s24, 0
      %p107 = por %p105, %p106
      %p108 = scmp.ne.s32.totalorder %s100, %s102
      %p109 = scmp.eq.s32.totalorder %s29, 1
      %p110 = por %p108, %p109
      %p111 = scmp.ne.s32.totalorder %s102, %s103
      %p112 = scmp.eq.s32.totalorder %s29, 0
      %p113 = por %p111, %p112
      %p114 = scmp.ne.s32.totalorder %s102, %s103
      %p115 = scmp.eq.s32.totalorder %s30, 1
      %p116 = por %p114, %p115
      %p118 = scmp.ne.s32.totalorder %s103, %s117
      %p119 = scmp.eq.s32.totalorder %s30, 0
      %p120 = por %p118, %p119
      %s122 = sadd.s32 %s121, 1
      %p125 = scmp.eq.s32.totalorder %s24, 1
      %p126 = scmp.ne.s32.totalorder %s121, %s123
      %p127 = scmp.eq.s32.totalorder %s24, 0
      %p128 = por %p126, %p127
      %p129 = scmp.ne.s32.totalorder %s121, %s123
      %p130 = scmp.eq.s32.totalorder %s29, 1
      %p131 = por %p129, %p130
      %p132 = scmp.ne.s32.totalorder %s123, %s124
      %p133 = scmp.eq.s32.totalorder %s29, 0
      %p134 = por %p132, %p133
      %p135 = scmp.ne.s32.totalorder %s123, %s124
      %p136 = scmp.eq.s32.totalorder %s30, 1
      %p137 = por %p135, %p136
      %p139 = scmp.ne.s32.totalorder %s124, %s138
      %p140 = scmp.eq.s32.totalorder %s30, 0
      %p141 = por %p139, %p140
      %s142 = ssub.s32 %s24, %s31
      %p143 = scmp.eq.s32.totalorder %s142, 0
      %s145 = sadd.s32 %s144, 1
      %s146 = scalar_select %p143, %s144, %s145
      %p149 = pneg %p143
      %p150 = scmp.eq.s32.totalorder %s24, 1
      %p151 = por %p149, %p150
      %p152 = scmp.ne.s32.totalorder %s144, %s147
      %p153 = scmp.eq.s32.totalorder %s24, 0
      %p154 = por %p152, %p153
      %p155 = scmp.ne.s32.totalorder %s144, %s147
      %p156 = scmp.eq.s32.totalorder %s29, 1
      %p157 = por %p155, %p156
      %p158 = scmp.ne.s32.totalorder %s147, %s148
      %p159 = scmp.eq.s32.totalorder %s29, 0
      %p160 = por %p158, %p159
      %p161 = scmp.ne.s32.totalorder %s147, %s148
      %p162 = scmp.eq.s32.totalorder %s30, 1
      %p163 = por %p161, %p162
      %p165 = scmp.ne.s32.totalorder %s148, %s164
      %p166 = scmp.eq.s32.totalorder %s30, 0
      %p167 = por %p165, %p166
      %s168 = ssub.s32 %s24, %s31
      %p169 = scmp.eq.s32.totalorder %s168, 0
      %s171 = sadd.s32 %s170, 1
      %s172 = scalar_select %p169, %s170, %s171
      %p175 = pneg %p169
      %p176 = scmp.eq.s32.totalorder %s24, 1
      %p177 = por %p175, %p176
      %p178 = scmp.ne.s32.totalorder %s170, %s173
      %p179 = scmp.eq.s32.totalorder %s24, 0
      %p180 = por %p178, %p179
      %p181 = scmp.ne.s32.totalorder %s170, %s173
      %p182 = scmp.eq.s32.totalorder %s29, 1
      %p183 = por %p181, %p182
      %p184 = scmp.ne.s32.totalorder %s173, %s174
      %p185 = scmp.eq.s32.totalorder %s29, 0
      %p186 = por %p184, %p185
      %p187 = scmp.ne.s32.totalorder %s173, %s174
      %p188 = scmp.eq.s32.totalorder %s30, 1
      %p189 = por %p187, %p188
      %p191 = scmp.ne.s32.totalorder %s174, %s190
      %p192 = scmp.eq.s32.totalorder %s30, 0
      %p193 = por %p191, %p192
      %p194 = scmp.le.s32.totalorder 1, %s24
      %p195 = scmp.lt.s32.totalorder %s24, 3
      %p196 = pnand %p194, %p195
      %p197 = pneg %p196
      // Predicated region
      $region9: #{tpu_custom_call.1} parent=5 // pred_check
        _
      $region10: #{tpu_custom_call.1} parent=5 // pred_check_branch
        %199 = sbr.rel (%p196) target = $region12
      $region11: #{tpu_custom_call.1} parent=5 // pred_region
        %s200 = ssub.s32 %s24, 1
        // Predicated region
        $region13: #{tpu_custom_call.1} parent=11 // pred_check
          %p201 = pneg %p71
        $region14: #{tpu_custom_call.1} parent=11 // pred_check_branch
          %203 = sbr.rel (%p201) target = $region16
        $region15: #{tpu_custom_call.1} parent=11 // pred_region
          %s205 = ssub.s32 512, 512
          %206 = vsyncadd [#allocation6], %s205
          %s207 = sshll.u32 [#allocation5], 4
          %s208 = int_to_ptr.vmem [resolvable:$true] %s207
          %213 = dma.hbm_to_vmem [thread:$0]  %s1, 512, %s208, [#allocation6], 64, 64, 4
        $region16: #{tpu_custom_call.1} parent=11 // pred_fallthru
          _
        // Predicated region
        $region17: #{tpu_custom_call.1} parent=11 // pred_check
          %p214 = pneg %p92
        $region18: #{tpu_custom_call.1} parent=11 // pred_check_branch
          %216 = sbr.rel (%p214) target = $region20
        $region19: #{tpu_custom_call.1} parent=11 // pred_region
          %s218 = ssub.s32 16, 16
          %219 = vsyncadd [#allocation6], %s218
          %s221 = sshll.u32 [#allocation7], 4
          %s222 = int_to_ptr.vmem [resolvable:$true] %s221
          %224 = dma.hbm_to_vmem [thread:$0]  %s2, 16, %s222, [#allocation6]
        $region20: #{tpu_custom_call.1} parent=11 // pred_fallthru
          _
        // Predicated region
        $region21: #{tpu_custom_call.1} parent=11 // pred_check
          %p225 = pneg %p113
        $region22: #{tpu_custom_call.1} parent=11 // pred_check_branch
          %227 = sbr.rel (%p225) target = $region24
        $region23: #{tpu_custom_call.1} parent=11 // pred_region
          %s229 = ssub.s32 1024, 1024
          %230 = vsyncadd [#allocation9], %s229
          %s231 = sshll.u32 [#allocation8], 4
          %s232 = int_to_ptr.vmem [resolvable:$true] %s231
          %237 = dma.hbm_to_vmem [thread:$0]  %s3, 1024, %s232, [#allocation9], 64, 64, 4
        $region24: #{tpu_custom_call.1} parent=11 // pred_fallthru
          _
        // Predicated region
        $region25: #{tpu_custom_call.1} parent=11 // pred_check
          %p238 = pneg %p134
        $region26: #{tpu_custom_call.1} parent=11 // pred_check_branch
          %240 = sbr.rel (%p238) target = $region28
        $region27: #{tpu_custom_call.1} parent=11 // pred_region
          %s242 = ssub.s32 16, 16
          %243 = vsyncadd [#allocation9], %s242
          %s245 = sshll.u32 [#allocation10], 4
          %s246 = int_to_ptr.vmem [resolvable:$true] %s245
          %248 = dma.hbm_to_vmem [thread:$0]  %s4, 16, %s246, [#allocation9]
        $region28: #{tpu_custom_call.1} parent=11 // pred_fallthru
          _
      $region12: #{tpu_custom_call.1} parent=5 // pred_fallthru
        _
      %p249 = scmp.lt.s32.totalorder %s24, 2
      // Predicated region
      $region29: #{tpu_custom_call.1} parent=5 // pred_check
        %p250 = pneg %p249
      $region30: #{tpu_custom_call.1} parent=5 // pred_check_branch
        %252 = sbr.rel (%p250) target = $region32
      $region31: #{tpu_custom_call.1} parent=5 // pred_region
        // Predicated region
        $region33: #{tpu_custom_call.1} parent=31 // pred_check
          %p253 = pneg %p44
        $region34: #{tpu_custom_call.1} parent=31 // pred_check_branch
          %255 = sbr.rel (%p253) target = $region36
        $region35: #{tpu_custom_call.1} parent=31 // pred_region
          %s256 = sand.u32 %s34, 1
          %s257 = scalar_lea.sflag [#allocation3], %s256
          %s258 = sand.u32 %s34, 1
          %s259 = smul.addr %s258, 128
          %s260 = scalar_lea.vmem [#allocation2], %s259
          %s261 = smul.u32 16, %s24
          %s263 = ssub.s32 2048, 2048
          %264 = vsyncadd %s257, %s263
          %s265 = smul.addr %s261, 128
          %s266 = scalar_lea.hbm %s0, %s265
          %s267 = sshll.u32 %s260, 4
          %s268 = int_to_ptr.vmem [resolvable:$true] %s267
          %273 = dma.hbm_to_vmem [thread:$0]  %s266, 2048, %s268, %s257, 128, 128, 8
        $region36: #{tpu_custom_call.1} parent=31 // pred_fallthru
          _
      $region32: #{tpu_custom_call.1} parent=5 // pred_fallthru
        _
      %p274 = scmp.le.s32.totalorder 1, %s24
      %p275 = scmp.lt.s32.totalorder %s24, 3
      %p276 = pnand %p274, %p275
      %p277 = pneg %p276
      // Predicated region
      $region37: #{tpu_custom_call.1} parent=5 // pred_check
        _
      $region38: #{tpu_custom_call.1} parent=5 // pred_check_branch
        %279 = sbr.rel (%p276) target = $region40
      $region39: #{tpu_custom_call.1} parent=5 // pred_region
        %s280 = ssub.s32 %s24, 1
        %s281 = sand.u32 %s37, 1
        %s282 = scalar_lea.sflag [#allocation3], %s281
        %s283 = sand.u32 %s37, 1
        %s284 = smul.addr %s283, 128
        %s285 = scalar_lea.vmem [#allocation2], %s284
        // Predicated region
        $region41: #{tpu_custom_call.1} parent=39 // pred_check
          %p286 = pneg %p50
        $region42: #{tpu_custom_call.1} parent=39 // pred_check_branch
          %288 = sbr.rel (%p286) target = $region44
        $region43: #{tpu_custom_call.1} parent=39 // pred_region
          %289 = dma.done %s282, 2048
        $region44: #{tpu_custom_call.1} parent=39 // pred_fallthru
          _
        // Predicated region
        $region45: #{tpu_custom_call.1} parent=39 // pred_check
          %p290 = pneg %p71
        $region46: #{tpu_custom_call.1} parent=39 // pred_check_branch
          %292 = sbr.rel (%p290) target = $region48
        $region47: #{tpu_custom_call.1} parent=39 // pred_region
          %293 = dma.done [#allocation6], 512
        $region48: #{tpu_custom_call.1} parent=39 // pred_fallthru
          _
        // Predicated region
        $region49: #{tpu_custom_call.1} parent=39 // pred_check
          %p294 = pneg %p92
        $region50: #{tpu_custom_call.1} parent=39 // pred_check_branch
          %296 = sbr.rel (%p294) target = $region52
        $region51: #{tpu_custom_call.1} parent=39 // pred_region
          %297 = dma.done [#allocation6], 16
        $region52: #{tpu_custom_call.1} parent=39 // pred_fallthru
          _
        // Predicated region
        $region53: #{tpu_custom_call.1} parent=39 // pred_check
          %p298 = pneg %p113
        $region54: #{tpu_custom_call.1} parent=39 // pred_check_branch
          %300 = sbr.rel (%p298) target = $region56
        $region55: #{tpu_custom_call.1} parent=39 // pred_region
          %301 = dma.done [#allocation9], 1024
        $region56: #{tpu_custom_call.1} parent=39 // pred_fallthru
          _
        // Predicated region
        $region57: #{tpu_custom_call.1} parent=39 // pred_check
          %p302 = pneg %p134
        $region58: #{tpu_custom_call.1} parent=39 // pred_check_branch
          %304 = sbr.rel (%p302) target = $region60
        $region59: #{tpu_custom_call.1} parent=39 // pred_region
          %305 = dma.done [#allocation9], 16
        $region60: #{tpu_custom_call.1} parent=39 // pred_fallthru
          _
        %s306 = sand.u32 %s37, 1
        %s307 = scalar_lea.sflag [#allocation3], %s306
        %s308 = sand.u32 %s37, 1
        %s309 = smul.addr %s308, 128
        %s310 = scalar_lea.vmem [#allocation2], %s309
        %p311 = pneg %p50
        %p312 = pneg %p47
        %p313 = pneg %p71
        %p314 = pneg %p68
        %p315 = pneg %p92
        %p316 = pneg %p89
        %p317 = pneg %p113
        %p318 = pneg %p110
        %p319 = pneg %p134
        %p320 = pneg %p131
        %p321 = pneg %p160
        %p322 = pneg %p157
        %s323 = sand.u32 %s147, 1
        %s324 = scalar_lea.sflag [#allocation4], %s323
        %s325 = sand.u32 %s147, 1
        %s326 = smul.addr %s325, 128
        %s327 = scalar_lea.vmem [#allocation11], %s326
        %p328 = pneg %p186
        %p329 = pneg %p183
        %s330 = sand.u32 %s173, 1
        %s331 = scalar_lea.sflag [#allocation13], %s330
        %s332 = sand.u32 %s173, 1
        %s333 = smul.addr %s332, 128
        %s334 = scalar_lea.vmem [#allocation12], %s333
        %s335 = smul.u32 16, %s29
        %s336 = smul.u32 16, %s29
        %s337 = smul.u32 16, %s29
        %v339 = vld [vmem:[%s285] sm:$0xff]
        %v340 = vld [vmem:[%s285 + $0x8] sm:$0xff]
        %v341 = vld [vmem:[%s285 + $0x10] sm:$0xff]
        %v342 = vld [vmem:[%s285 + $0x18] sm:$0xff]
        %v343 = vld [vmem:[%s285 + $0x20] sm:$0xff]
        %v344 = vld [vmem:[%s285 + $0x28] sm:$0xff]
        %v345 = vld [vmem:[%s285 + $0x30] sm:$0xff]
        %v346 = vld [vmem:[%s285 + $0x38] sm:$0xff]
        %v347 = vld [vmem:[%s285 + $0x40] sm:$0xff]
        %v348 = vld [vmem:[%s285 + $0x48] sm:$0xff]
        %v349 = vld [vmem:[%s285 + $0x50] sm:$0xff]
        %v350 = vld [vmem:[%s285 + $0x58] sm:$0xff]
        %v351 = vld [vmem:[%s285 + $0x60] sm:$0xff]
        %v352 = vld [vmem:[%s285 + $0x68] sm:$0xff]
        %v353 = vld [vmem:[%s285 + $0x70] sm:$0xff]
        %v354 = vld [vmem:[%s285 + $0x78] sm:$0xff]
        %v355 = vpack.c.bf16 %v340, %v339
        %v356 = vpack.c.bf16 %v342, %v341
        %v357 = vpack.c.bf16 %v344, %v343
        %v358 = vpack.c.bf16 %v346, %v345
        %v359 = vpack.c.bf16 %v348, %v347
        %v360 = vpack.c.bf16 %v350, %v349
        %v361 = vpack.c.bf16 %v352, %v351
        %v362 = vpack.c.bf16 %v354, %v353
        %v363 = vld [vmem:[#allocation5] sm:$0xf]
        %v364 = vld [vmem:[#allocation5 + $0x4] sm:$0xf]
        %v365 = vld [vmem:[#allocation5 + $0x8] sm:$0xf]
        %v366 = vld [vmem:[#allocation5 + $0xc] sm:$0xf]
        %v367 = vld [vmem:[#allocation5 + $0x10] sm:$0xf]
        %v368 = vld [vmem:[#allocation5 + $0x14] sm:$0xf]
        %v369 = vld [vmem:[#allocation5 + $0x18] sm:$0xf]
        %v370 = vld [vmem:[#allocation5 + $0x1c] sm:$0xf]
        %v371 = vld [vmem:[#allocation7] sm:$0x1]
        %v373 = vlaneseq
        %v374 = vshrl.u32 %v373, 7
        %v375 = vsub.s32 0, %v374
        %v376 = vrot.slane %v371, %v375
        %v386 = vunpack.c.l.b16 %v363
        %v387 = vunpack.c.l.b16 %v364
        %v388 = vunpack.c.l.b16 %v365
        %v389 = vunpack.c.l.b16 %v366
        %v390 = vunpack.c.l.b16 %v367
        %v391 = vunpack.c.l.b16 %v368
        %v392 = vunpack.c.l.b16 %v369
        %v393 = vunpack.c.l.b16 %v370
        %v394 = vpack.c.b16 %v387, %v386
        %v395 = vpack.c.b16 %v389, %v388
        %v396 = vpack.c.b16 %v391, %v390
        %v397 = vpack.c.b16 %v393, %v392
        %vm402 = vcmask 523264
        %v404 = vsel %vm402, %v355, 0
        %v407 = vsel %vm402, %v356, 0
        %v410 = vsel %vm402, %v357, 0
        %v413 = vsel %vm402, %v358, 0
        %v416 = vsel %vm402, %v359, 0
        %v419 = vsel %vm402, %v360, 0
        %v422 = vsel %vm402, %v361, 0
        %v425 = vsel %vm402, %v362, 0
        %427 = vmatprep.subr.bf16.mxu0 0
        %428 = vmatpush1.bf16.msra.mxu0 %v394
        %429 = vmatprep.subr.bf16.mxu0 0
        %430 = vmatpush1.bf16.msra.mxu0 %v395
        %431 = vmatprep.subr.bf16.mxu0 0
        %432 = vmatpush1.bf16.msra.mxu0 %v396
        %433 = vmatprep.subr.bf16.mxu0 0
        %434 = vmatpush1.bf16.msra.mxu0 %v397
        %435 = vmatprep.subr.bf16.mxu0 0
        %436 = vmatpush1.bf16.msra.mxu0 0
        %437 = vmatprep.subr.bf16.mxu0 0
        %438 = vmatpush1.bf16.msra.mxu0 0
        %439 = vmatprep.subr.bf16.mxu0 0
        %440 = vmatpush1.bf16.msra.mxu0 0
        %441 = vmatprep.subr.bf16.mxu0 0
        %442 = vmatpush1.bf16.msra.mxu0 0
        %443 = vmatprep.subr.bf16.mxu0 0
        %444 = vmatpush1.bf16.msra.mxu0 0
        %445 = vmatprep.subr.bf16.mxu0 0
        %446 = vmatpush1.bf16.msra.mxu0 0
        %447 = vmatprep.subr.bf16.mxu0 0
        %448 = vmatpush1.bf16.msra.mxu0 0
        %449 = vmatprep.subr.bf16.mxu0 0
        %450 = vmatpush1.bf16.msra.mxu0 0
        %451 = vmatprep.subr.bf16.mxu0 0
        %452 = vmatpush1.bf16.msra.mxu0 0
        %453 = vmatprep.subr.bf16.mxu0 0
        %454 = vmatpush1.bf16.msra.mxu0 0
        %455 = vmatprep.subr.bf16.mxu0 0
        %456 = vmatpush1.bf16.msra.mxu0 0
        %457 = vmatprep.subr.bf16.mxu0 0
        %458 = vmatpush1.bf16.msra.mxu0 0
        %459 = vmatprep.mubr.bf16.mxu0 0
        %460 = vmatmul.mubr.bf16.gmra.mrb[0].mxu0 %v404
        %v461 = vpop.f32.mrb[0].mxu0
        %v462 = vadd.f32 %v376, %v461
        %v463 = vpop.f32.mrb[0].mxu0
        %v464 = vpop.f32.mrb[0].mxu0
        %v465 = vadd.f32 %v376, %v464
        %v466 = vpop.f32.mrb[0].mxu0
        %467 = vmatprep.mubr.bf16.mxu0 0
        %468 = vmatmul.mubr.bf16.gmra.mrb[0].mxu0 %v407
        %v469 = vpop.f32.mrb[0].mxu0
        %v470 = vadd.f32 %v376, %v469
        %v471 = vpop.f32.mrb[0].mxu0
        %v472 = vpop.f32.mrb[0].mxu0
        %v473 = vadd.f32 %v376, %v472
        %v474 = vpop.f32.mrb[0].mxu0
        %475 = vmatprep.mubr.bf16.mxu0 0
        %476 = vmatmul.mubr.bf16.gmra.mrb[0].mxu0 %v410
        %v477 = vpop.f32.mrb[0].mxu0
        %v478 = vadd.f32 %v376, %v477
        %v479 = vpop.f32.mrb[0].mxu0
        %v480 = vpop.f32.mrb[0].mxu0
        %v481 = vadd.f32 %v376, %v480
        %v482 = vpop.f32.mrb[0].mxu0
        %483 = vmatprep.mubr.bf16.mxu0 0
        %484 = vmatmul.mubr.bf16.gmra.mrb[0].mxu0 %v413
        %v485 = vpop.f32.mrb[0].mxu0
        %v486 = vadd.f32 %v376, %v485
        %v487 = vpop.f32.mrb[0].mxu0
        %v488 = vpop.f32.mrb[0].mxu0
        %v489 = vadd.f32 %v376, %v488
        %v490 = vpop.f32.mrb[0].mxu0
        %491 = vmatprep.mubr.bf16.mxu0 0
        %492 = vmatmul.mubr.bf16.gmra.mrb[0].mxu0 %v416
        %v493 = vpop.f32.mrb[0].mxu0
        %v494 = vadd.f32 %v376, %v493
        %v495 = vpop.f32.mrb[0].mxu0
        %v496 = vpop.f32.mrb[0].mxu0
        %v497 = vadd.f32 %v376, %v496
        %v498 = vpop.f32.mrb[0].mxu0
        %499 = vmatprep.mubr.bf16.mxu0 0
        %500 = vmatmul.mubr.bf16.gmra.mrb[0].mxu0 %v419
        %v501 = vpop.f32.mrb[0].mxu0
        %v502 = vadd.f32 %v376, %v501
        %v503 = vpop.f32.mrb[0].mxu0
        %v504 = vpop.f32.mrb[0].mxu0
        %v505 = vadd.f32 %v376, %v504
        %v506 = vpop.f32.mrb[0].mxu0
        %507 = vmatprep.mubr.bf16.mxu0 0
        %508 = vmatmul.mubr.bf16.gmra.mrb[0].mxu0 %v422
        %v509 = vpop.f32.mrb[0].mxu0
        %v510 = vadd.f32 %v376, %v509
        %v511 = vpop.f32.mrb[0].mxu0
        %v512 = vpop.f32.mrb[0].mxu0
        %v513 = vadd.f32 %v376, %v512
        %v514 = vpop.f32.mrb[0].mxu0
        %515 = vmatprep.mubr.bf16.mxu0 0
        %516 = vmatmul.mubr.bf16.gmra.mrb[0].mxu0 %v425
        %v517 = vpop.f32.mrb[0].mxu0
        %v518 = vadd.f32 %v376, %v517
        %v519 = vpop.f32.mrb[0].mxu0
        %v520 = vpop.f32.mrb[0].mxu0
        %v521 = vadd.f32 %v376, %v520
        %v522 = vpop.f32.mrb[0].mxu0
        %523 = vdwg.mxu0
        %v524 = vmax.f32 %v462, 0.0
        %v525 = vmax.f32 %v465, 0.0
        %v526 = vmax.f32 %v470, 0.0
        %v527 = vmax.f32 %v473, 0.0
        %v528 = vmax.f32 %v478, 0.0
        %v529 = vmax.f32 %v481, 0.0
        %v530 = vmax.f32 %v486, 0.0
        %v531 = vmax.f32 %v489, 0.0
        %v532 = vmax.f32 %v494, 0.0
        %v533 = vmax.f32 %v497, 0.0
        %v534 = vmax.f32 %v502, 0.0
        %v535 = vmax.f32 %v505, 0.0
        %v536 = vmax.f32 %v510, 0.0
        %v537 = vmax.f32 %v513, 0.0
        %v538 = vmax.f32 %v518, 0.0
        %v539 = vmax.f32 %v521, 0.0
        %v540 = vpack.c.bf16 %v525, %v524
        %v541 = vpack.c.bf16 %v527, %v526
        %v542 = vpack.c.bf16 %v529, %v528
        %v543 = vpack.c.bf16 %v531, %v530
        %v544 = vpack.c.bf16 %v533, %v532
        %v545 = vpack.c.bf16 %v535, %v534
        %v546 = vpack.c.bf16 %v537, %v536
        %v547 = vpack.c.bf16 %v539, %v538
        %v548 = vld [vmem:[#allocation8] sm:$0xf]
        %v549 = vld [vmem:[#allocation8 + $0x4] sm:$0xf]
        %v550 = vld [vmem:[#allocation8 + $0x8] sm:$0xf]
        %v551 = vld [vmem:[#allocation8 + $0xc] sm:$0xf]
        %v552 = vld [vmem:[#allocation8 + $0x10] sm:$0xf]
        %v553 = vld [vmem:[#allocation8 + $0x14] sm:$0xf]
        %v554 = vld [vmem:[#allocation8 + $0x18] sm:$0xf]
        %v555 = vld [vmem:[#allocation8 + $0x1c] sm:$0xf]
        %v556 = vld [vmem:[#allocation8 + $0x20] sm:$0xf]
        %v557 = vld [vmem:[#allocation8 + $0x24] sm:$0xf]
        %v558 = vld [vmem:[#allocation8 + $0x28] sm:$0xf]
        %v559 = vld [vmem:[#allocation8 + $0x2c] sm:$0xf]
        %v560 = vld [vmem:[#allocation8 + $0x30] sm:$0xf]
        %v561 = vld [vmem:[#allocation8 + $0x34] sm:$0xf]
        %v562 = vld [vmem:[#allocation8 + $0x38] sm:$0xf]
        %v563 = vld [vmem:[#allocation8 + $0x3c] sm:$0xf]
        %v564 = vld [vmem:[#allocation10] sm:$0x1]
        %v566 = vlaneseq
        %v567 = vshrl.u32 %v566, 7
        %v568 = vsub.s32 0, %v567
        %v569 = vrot.slane %v564, %v568
        %v587 = vunpack.c.l.b16 %v548
        %v588 = vunpack.c.l.b16 %v549
        %v589 = vunpack.c.l.b16 %v550
        %v590 = vunpack.c.l.b16 %v551
        %v591 = vunpack.c.l.b16 %v552
        %v592 = vunpack.c.l.b16 %v553
        %v593 = vunpack.c.l.b16 %v554
        %v594 = vunpack.c.l.b16 %v555
        %v595 = vunpack.c.l.b16 %v556
        %v596 = vunpack.c.l.b16 %v557
        %v597 = vunpack.c.l.b16 %v558
        %v598 = vunpack.c.l.b16 %v559
        %v599 = vunpack.c.l.b16 %v560
        %v600 = vunpack.c.l.b16 %v561
        %v601 = vunpack.c.l.b16 %v562
        %v602 = vunpack.c.l.b16 %v563
        %v603 = vpack.c.b16 %v588, %v587
        %v604 = vpack.c.b16 %v590, %v589
        %v605 = vpack.c.b16 %v592, %v591
        %v606 = vpack.c.b16 %v594, %v593
        %v607 = vpack.c.b16 %v596, %v595
        %v608 = vpack.c.b16 %v598, %v597
        %v609 = vpack.c.b16 %v600, %v599
        %v610 = vpack.c.b16 %v602, %v601
        %619 = vmatprep.subr.bf16.mxu0 0
        %620 = vmatpush1.bf16.msra.mxu0 %v603
        %621 = vmatprep.subr.bf16.mxu0 0
        %622 = vmatpush1.bf16.msra.mxu0 %v604
        %623 = vmatprep.subr.bf16.mxu0 0
        %624 = vmatpush1.bf16.msra.mxu0 %v605
        %625 = vmatprep.subr.bf16.mxu0 0
        %626 = vmatpush1.bf16.msra.mxu0 %v606
        %627 = vmatprep.subr.bf16.mxu0 0
        %628 = vmatpush1.bf16.msra.mxu0 %v607
        %629 = vmatprep.subr.bf16.mxu0 0
        %630 = vmatpush1.bf16.msra.mxu0 %v608
        %631 = vmatprep.subr.bf16.mxu0 0
        %632 = vmatpush1.bf16.msra.mxu0 %v609
        %633 = vmatprep.subr.bf16.mxu0 0
        %634 = vmatpush1.bf16.msra.mxu0 %v610
        %635 = vmatprep.subr.bf16.mxu0 0
        %636 = vmatpush1.bf16.msra.mxu0 0
        %637 = vmatprep.subr.bf16.mxu0 0
        %638 = vmatpush1.bf16.msra.mxu0 0
        %639 = vmatprep.subr.bf16.mxu0 0
        %640 = vmatpush1.bf16.msra.mxu0 0
        %641 = vmatprep.subr.bf16.mxu0 0
        %642 = vmatpush1.bf16.msra.mxu0 0
        %643 = vmatprep.subr.bf16.mxu0 0
        %644 = vmatpush1.bf16.msra.mxu0 0
        %645 = vmatprep.subr.bf16.mxu0 0
        %646 = vmatpush1.bf16.msra.mxu0 0
        %647 = vmatprep.subr.bf16.mxu0 0
        %648 = vmatpush1.bf16.msra.mxu0 0
        %649 = vmatprep.subr.bf16.mxu0 0
        %650 = vmatpush1.bf16.msra.mxu0 0
        %651 = vmatprep.mubr.bf16.mxu0 0
        %652 = vmatmul.mubr.bf16.gmra.mrb[0].mxu0 %v540
        %v653 = vpop.f32.mrb[0].mxu0
        %v654 = vadd.f32 %v569, %v653
        %v655 = vpop.f32.mrb[0].mxu0
        %v656 = vpop.f32.mrb[0].mxu0
        %v657 = vadd.f32 %v569, %v656
        %v658 = vpop.f32.mrb[0].mxu0
        %659 = vmatprep.mubr.bf16.mxu0 0
        %660 = vmatmul.mubr.bf16.gmra.mrb[0].mxu0 %v541
        %v661 = vpop.f32.mrb[0].mxu0
        %v662 = vadd.f32 %v569, %v661
        %v663 = vpop.f32.mrb[0].mxu0
        %v664 = vpop.f32.mrb[0].mxu0
        %v665 = vadd.f32 %v569, %v664
        %v666 = vpop.f32.mrb[0].mxu0
        %667 = vmatprep.mubr.bf16.mxu0 0
        %668 = vmatmul.mubr.bf16.gmra.mrb[0].mxu0 %v542
        %v669 = vpop.f32.mrb[0].mxu0
        %v670 = vadd.f32 %v569, %v669
        %v671 = vpop.f32.mrb[0].mxu0
        %v672 = vpop.f32.mrb[0].mxu0
        %v673 = vadd.f32 %v569, %v672
        %v674 = vpop.f32.mrb[0].mxu0
        %675 = vmatprep.mubr.bf16.mxu0 0
        %676 = vmatmul.mubr.bf16.gmra.mrb[0].mxu0 %v543
        %v677 = vpop.f32.mrb[0].mxu0
        %v678 = vadd.f32 %v569, %v677
        %v679 = vpop.f32.mrb[0].mxu0
        %v680 = vpop.f32.mrb[0].mxu0
        %v681 = vadd.f32 %v569, %v680
        %v682 = vpop.f32.mrb[0].mxu0
        %683 = vmatprep.mubr.bf16.mxu0 0
        %684 = vmatmul.mubr.bf16.gmra.mrb[0].mxu0 %v544
        %v685 = vpop.f32.mrb[0].mxu0
        %v686 = vadd.f32 %v569, %v685
        %v687 = vpop.f32.mrb[0].mxu0
        %v688 = vpop.f32.mrb[0].mxu0
        %v689 = vadd.f32 %v569, %v688
        %v690 = vpop.f32.mrb[0].mxu0
        %691 = vmatprep.mubr.bf16.mxu0 0
        %692 = vmatmul.mubr.bf16.gmra.mrb[0].mxu0 %v545
        %v693 = vpop.f32.mrb[0].mxu0
        %v694 = vadd.f32 %v569, %v693
        %v695 = vpop.f32.mrb[0].mxu0
        %v696 = vpop.f32.mrb[0].mxu0
        %v697 = vadd.f32 %v569, %v696
        %v698 = vpop.f32.mrb[0].mxu0
        %699 = vmatprep.mubr.bf16.mxu0 0
        %700 = vmatmul.mubr.bf16.gmra.mrb[0].mxu0 %v546
        %v701 = vpop.f32.mrb[0].mxu0
        %v702 = vadd.f32 %v569, %v701
        %v703 = vpop.f32.mrb[0].mxu0
        %v704 = vpop.f32.mrb[0].mxu0
        %v705 = vadd.f32 %v569, %v704
        %v706 = vpop.f32.mrb[0].mxu0
        %707 = vmatprep.mubr.bf16.mxu0 0
        %708 = vmatmul.mubr.bf16.gmra.mrb[0].mxu0 %v547
        %v709 = vpop.f32.mrb[0].mxu0
        %v710 = vadd.f32 %v569, %v709
        %v711 = vpop.f32.mrb[0].mxu0
        %v712 = vpop.f32.mrb[0].mxu0
        %v713 = vadd.f32 %v569, %v712
        %v714 = vpop.f32.mrb[0].mxu0
        %715 = vdwg.mxu0
        %v716 = vadd.f32 %v654, 2.0
        %v717 = vadd.f32 %v657, 2.0
        %v718 = vadd.f32 %v662, 2.0
        %v719 = vadd.f32 %v665, 2.0
        %v720 = vadd.f32 %v670, 2.0
        %v721 = vadd.f32 %v673, 2.0
        %v722 = vadd.f32 %v678, 2.0
        %v723 = vadd.f32 %v681, 2.0
        %v724 = vadd.f32 %v686, 2.0
        %v725 = vadd.f32 %v689, 2.0
        %v726 = vadd.f32 %v694, 2.0
        %v727 = vadd.f32 %v697, 2.0
        %v728 = vadd.f32 %v702, 2.0
        %v729 = vadd.f32 %v705, 2.0
        %v730 = vadd.f32 %v710, 2.0
        %v731 = vadd.f32 %v713, 2.0
        %v732 = vxor.u32 %v716, 2147483648
        %v733 = vxor.u32 %v717, 2147483648
        %v734 = vxor.u32 %v718, 2147483648
        %v735 = vxor.u32 %v719, 2147483648
        %v736 = vxor.u32 %v720, 2147483648
        %v737 = vxor.u32 %v721, 2147483648
        %v738 = vxor.u32 %v722, 2147483648
        %v739 = vxor.u32 %v723, 2147483648
        %v740 = vxor.u32 %v724, 2147483648
        %v741 = vxor.u32 %v725, 2147483648
        %v742 = vxor.u32 %v726, 2147483648
        %v743 = vxor.u32 %v727, 2147483648
        %v744 = vxor.u32 %v728, 2147483648
        %v745 = vxor.u32 %v729, 2147483648
        %v746 = vxor.u32 %v730, 2147483648
        %v747 = vxor.u32 %v731, 2147483648
        %v748 = vmul.f32 %v732, 1.442695
        %v749 = vpow.pop %v748
        %v750 = vmul.f32 %v733, 1.442695
        %v751 = vpow.pop %v750
        %v752 = vmul.f32 %v734, 1.442695
        %v753 = vpow.pop %v752
        %v754 = vmul.f32 %v735, 1.442695
        %v755 = vpow.pop %v754
        %v756 = vmul.f32 %v736, 1.442695
        %v757 = vpow.pop %v756
        %v758 = vmul.f32 %v737, 1.442695
        %v759 = vpow.pop %v758
        %v760 = vmul.f32 %v738, 1.442695
        %v761 = vpow.pop %v760
        %v762 = vmul.f32 %v739, 1.442695
        %v763 = vpow.pop %v762
        %v764 = vmul.f32 %v740, 1.442695
        %v765 = vpow.pop %v764
        %v766 = vmul.f32 %v741, 1.442695
        %v767 = vpow.pop %v766
        %v768 = vmul.f32 %v742, 1.442695
        %v769 = vpow.pop %v768
        %v770 = vmul.f32 %v743, 1.442695
        %v771 = vpow.pop %v770
        %v772 = vmul.f32 %v744, 1.442695
        %v773 = vpow.pop %v772
        %v774 = vmul.f32 %v745, 1.442695
        %v775 = vpow.pop %v774
        %v776 = vmul.f32 %v746, 1.442695
        %v777 = vpow.pop %v776
        %v778 = vmul.f32 %v747, 1.442695
        %v779 = vpow.pop %v778
        %v780 = vadd.f32 %v749, 1.0
        %v781 = vadd.f32 %v751, 1.0
        %v782 = vadd.f32 %v753, 1.0
        %v783 = vadd.f32 %v755, 1.0
        %v784 = vadd.f32 %v757, 1.0
        %v785 = vadd.f32 %v759, 1.0
        %v786 = vadd.f32 %v761, 1.0
        %v787 = vadd.f32 %v763, 1.0
        %v788 = vadd.f32 %v765, 1.0
        %v789 = vadd.f32 %v767, 1.0
        %v790 = vadd.f32 %v769, 1.0
        %v791 = vadd.f32 %v771, 1.0
        %v792 = vadd.f32 %v773, 1.0
        %v793 = vadd.f32 %v775, 1.0
        %v794 = vadd.f32 %v777, 1.0
        %v795 = vadd.f32 %v779, 1.0
        %v796 = vrcp.pop %v780
        %v797 = vmul.f32 1.0, %v796
        %v798 = vrcp.pop %v781
        %v799 = vmul.f32 1.0, %v798
        %v800 = vrcp.pop %v782
        %v801 = vmul.f32 1.0, %v800
        %v802 = vrcp.pop %v783
        %v803 = vmul.f32 1.0, %v802
        %v804 = vrcp.pop %v784
        %v805 = vmul.f32 1.0, %v804
        %v806 = vrcp.pop %v785
        %v807 = vmul.f32 1.0, %v806
        %v808 = vrcp.pop %v786
        %v809 = vmul.f32 1.0, %v808
        %v810 = vrcp.pop %v787
        %v811 = vmul.f32 1.0, %v810
        %v812 = vrcp.pop %v788
        %v813 = vmul.f32 1.0, %v812
        %v814 = vrcp.pop %v789
        %v815 = vmul.f32 1.0, %v814
        %v816 = vrcp.pop %v790
        %v817 = vmul.f32 1.0, %v816
        %v818 = vrcp.pop %v791
        %v819 = vmul.f32 1.0, %v818
        %v820 = vrcp.pop %v792
        %v821 = vmul.f32 1.0, %v820
        %v822 = vrcp.pop %v793
        %v823 = vmul.f32 1.0, %v822
        %v824 = vrcp.pop %v794
        %v825 = vmul.f32 1.0, %v824
        %v826 = vrcp.pop %v795
        %v827 = vmul.f32 1.0, %v826
        %v828 = vadd.f32 %v797, 0.001
        %v829 = vadd.f32 %v799, 0.001
        %v830 = vadd.f32 %v801, 0.001
        %v831 = vadd.f32 %v803, 0.001
        %v832 = vadd.f32 %v805, 0.001
        %v833 = vadd.f32 %v807, 0.001
        %v834 = vadd.f32 %v809, 0.001
        %v835 = vadd.f32 %v811, 0.001
        %v836 = vadd.f32 %v813, 0.001
        %v837 = vadd.f32 %v815, 0.001
        %v838 = vadd.f32 %v817, 0.001
        %v839 = vadd.f32 %v819, 0.001
        %v840 = vadd.f32 %v821, 0.001
        %v841 = vadd.f32 %v823, 0.001
        %v842 = vadd.f32 %v825, 0.001
        %v843 = vadd.f32 %v827, 0.001
        %v844 = vmul.f32 %v828, %v339
        %v845 = vmul.f32 %v829, %v340
        %v846 = vmul.f32 %v830, %v341
        %v847 = vmul.f32 %v831, %v342
        %v848 = vmul.f32 %v832, %v343
        %v849 = vmul.f32 %v833, %v344
        %v850 = vmul.f32 %v834, %v345
        %v851 = vmul.f32 %v835, %v346
        %v852 = vmul.f32 %v836, %v347
        %v853 = vmul.f32 %v837, %v348
        %v854 = vmul.f32 %v838, %v349
        %v855 = vmul.f32 %v839, %v350
        %v856 = vmul.f32 %v840, %v351
        %v857 = vmul.f32 %v841, %v352
        %v858 = vmul.f32 %v842, %v353
        %v859 = vmul.f32 %v843, %v354
        %876 = vrot.lane.b32.xlu0 %v654, 64
        %v877 = vpop.permute.xlu0 %876
        %878 = vrot.lane.b32.xlu0 %v657, 64
        %v879 = vpop.permute.xlu0 %878
        %880 = vrot.lane.b32.xlu0 %v662, 64
        %v881 = vpop.permute.xlu0 %880
        %882 = vrot.lane.b32.xlu0 %v665, 64
        %v883 = vpop.permute.xlu0 %882
        %884 = vrot.lane.b32.xlu0 %v670, 64
        %v885 = vpop.permute.xlu0 %884
        %886 = vrot.lane.b32.xlu0 %v673, 64
        %v887 = vpop.permute.xlu0 %886
        %888 = vrot.lane.b32.xlu0 %v678, 64
        %v889 = vpop.permute.xlu0 %888
        %890 = vrot.lane.b32.xlu0 %v681, 64
        %v891 = vpop.permute.xlu0 %890
        %892 = vrot.lane.b32.xlu0 %v686, 64
        %v893 = vpop.permute.xlu0 %892
        %894 = vrot.lane.b32.xlu0 %v689, 64
        %v895 = vpop.permute.xlu0 %894
        %896 = vrot.lane.b32.xlu0 %v694, 64
        %v897 = vpop.permute.xlu0 %896
        %898 = vrot.lane.b32.xlu0 %v697, 64
        %v899 = vpop.permute.xlu0 %898
        %900 = vrot.lane.b32.xlu0 %v702, 64
        %v901 = vpop.permute.xlu0 %900
        %902 = vrot.lane.b32.xlu0 %v705, 64
        %v903 = vpop.permute.xlu0 %902
        %904 = vrot.lane.b32.xlu0 %v710, 64
        %v905 = vpop.permute.xlu0 %904
        %906 = vrot.lane.b32.xlu0 %v713, 64
        %v907 = vpop.permute.xlu0 %906
        %v924 = vadd.f32 %v844, %v877
        %v925 = vadd.f32 %v845, %v879
        %v926 = vadd.f32 %v846, %v881
        %v927 = vadd.f32 %v847, %v883
        %v928 = vadd.f32 %v848, %v885
        %v929 = vadd.f32 %v849, %v887
        %v930 = vadd.f32 %v850, %v889
        %v931 = vadd.f32 %v851, %v891
        %v932 = vadd.f32 %v852, %v893
        %v933 = vadd.f32 %v853, %v895
        %v934 = vadd.f32 %v854, %v897
        %v935 = vadd.f32 %v855, %v899
        %v936 = vadd.f32 %v856, %v901
        %v937 = vadd.f32 %v857, %v903
        %v938 = vadd.f32 %v858, %v905
        %v939 = vadd.f32 %v859, %v907
        %940 = vst.msk [vmem:[%s327] sm:$0xff] %vm402, %v924
        %941 = vst.msk [vmem:[%s327 + $0x8] sm:$0xff] %vm402, %v925
        %942 = vst.msk [vmem:[%s327 + $0x10] sm:$0xff] %vm402, %v926
        %943 = vst.msk [vmem:[%s327 + $0x18] sm:$0xff] %vm402, %v927
        %944 = vst.msk [vmem:[%s327 + $0x20] sm:$0xff] %vm402, %v928
        %945 = vst.msk [vmem:[%s327 + $0x28] sm:$0xff] %vm402, %v929
        %946 = vst.msk [vmem:[%s327 + $0x30] sm:$0xff] %vm402, %v930
        %947 = vst.msk [vmem:[%s327 + $0x38] sm:$0xff] %vm402, %v931
        %948 = vst.msk [vmem:[%s327 + $0x40] sm:$0xff] %vm402, %v932
        %949 = vst.msk [vmem:[%s327 + $0x48] sm:$0xff] %vm402, %v933
        %950 = vst.msk [vmem:[%s327 + $0x50] sm:$0xff] %vm402, %v934
        %951 = vst.msk [vmem:[%s327 + $0x58] sm:$0xff] %vm402, %v935
        %952 = vst.msk [vmem:[%s327 + $0x60] sm:$0xff] %vm402, %v936
        %953 = vst.msk [vmem:[%s327 + $0x68] sm:$0xff] %vm402, %v937
        %954 = vst.msk [vmem:[%s327 + $0x70] sm:$0xff] %vm402, %v938
        %955 = vst.msk [vmem:[%s327 + $0x78] sm:$0xff] %vm402, %v939
        %v956 = vlog2.pop %v828
        %v957 = vmul.f32 %v956, 0.6931472
        %v958 = vlog2.pop %v829
        %v959 = vmul.f32 %v958, 0.6931472
        %v960 = vlog2.pop %v830
        %v961 = vmul.f32 %v960, 0.6931472
        %v962 = vlog2.pop %v831
        %v963 = vmul.f32 %v962, 0.6931472
        %v964 = vlog2.pop %v832
        %v965 = vmul.f32 %v964, 0.6931472
        %v966 = vlog2.pop %v833
        %v967 = vmul.f32 %v966, 0.6931472
        %v968 = vlog2.pop %v834
        %v969 = vmul.f32 %v968, 0.6931472
        %v970 = vlog2.pop %v835
        %v971 = vmul.f32 %v970, 0.6931472
        %v972 = vlog2.pop %v836
        %v973 = vmul.f32 %v972, 0.6931472
        %v974 = vlog2.pop %v837
        %v975 = vmul.f32 %v974, 0.6931472
        %v976 = vlog2.pop %v838
        %v977 = vmul.f32 %v976, 0.6931472
        %v978 = vlog2.pop %v839
        %v979 = vmul.f32 %v978, 0.6931472
        %v980 = vlog2.pop %v840
        %v981 = vmul.f32 %v980, 0.6931472
        %v982 = vlog2.pop %v841
        %v983 = vmul.f32 %v982, 0.6931472
        %v984 = vlog2.pop %v842
        %v985 = vmul.f32 %v984, 0.6931472
        %v986 = vlog2.pop %v843
        %v987 = vmul.f32 %v986, 0.6931472
        %v988 = vsel %vm402, %v957, 0.0
        %989 = vadd.xlane.f32.xlu0 %v988
        %v990 = vpop.xlane.xlu0 %989
        %v991 = vsel %vm402, %v959, 0.0
        %992 = vadd.xlane.f32.xlu0 %v991
        %v993 = vpop.xlane.xlu0 %992
        %v994 = vsel %vm402, %v961, 0.0
        %995 = vadd.xlane.f32.xlu0 %v994
        %v996 = vpop.xlane.xlu0 %995
        %v997 = vsel %vm402, %v963, 0.0
        %998 = vadd.xlane.f32.xlu0 %v997
        %v999 = vpop.xlane.xlu0 %998
        %v1000 = vsel %vm402, %v965, 0.0
        %1001 = vadd.xlane.f32.xlu0 %v1000
        %v1002 = vpop.xlane.xlu0 %1001
        %v1003 = vsel %vm402, %v967, 0.0
        %1004 = vadd.xlane.f32.xlu0 %v1003
        %v1005 = vpop.xlane.xlu0 %1004
        %v1006 = vsel %vm402, %v969, 0.0
        %1007 = vadd.xlane.f32.xlu0 %v1006
        %v1008 = vpop.xlane.xlu0 %1007
        %v1009 = vsel %vm402, %v971, 0.0
        %1010 = vadd.xlane.f32.xlu0 %v1009
        %v1011 = vpop.xlane.xlu0 %1010
        %v1012 = vsel %vm402, %v973, 0.0
        %1013 = vadd.xlane.f32.xlu0 %v1012
        %v1014 = vpop.xlane.xlu0 %1013
        %v1015 = vsel %vm402, %v975, 0.0
        %1016 = vadd.xlane.f32.xlu0 %v1015
        %v1017 = vpop.xlane.xlu0 %1016
        %v1018 = vsel %vm402, %v977, 0.0
        %1019 = vadd.xlane.f32.xlu0 %v1018
        %v1020 = vpop.xlane.xlu0 %1019
        %v1021 = vsel %vm402, %v979, 0.0
        %1022 = vadd.xlane.f32.xlu0 %v1021
        %v1023 = vpop.xlane.xlu0 %1022
        %v1024 = vsel %vm402, %v981, 0.0
        %1025 = vadd.xlane.f32.xlu0 %v1024
        %v1026 = vpop.xlane.xlu0 %1025
        %v1027 = vsel %vm402, %v983, 0.0
        %1028 = vadd.xlane.f32.xlu0 %v1027
        %v1029 = vpop.xlane.xlu0 %1028
        %v1030 = vsel %vm402, %v985, 0.0
        %1031 = vadd.xlane.f32.xlu0 %v1030
        %v1032 = vpop.xlane.xlu0 %1031
        %v1033 = vsel %vm402, %v987, 0.0
        %1034 = vadd.xlane.f32.xlu0 %v1033
        %v1035 = vpop.xlane.xlu0 %1034
        %1036 = vst [vmem:[%s334] sm:$0xff] %v990
        %1037 = vst [vmem:[%s334 + $0x8] sm:$0xff] %v993
        %1038 = vst [vmem:[%s334 + $0x10] sm:$0xff] %v996
        %1039 = vst [vmem:[%s334 + $0x18] sm:$0xff] %v999
        %1040 = vst [vmem:[%s334 + $0x20] sm:$0xff] %v1002
        %1041 = vst [vmem:[%s334 + $0x28] sm:$0xff] %v1005
        %1042 = vst [vmem:[%s334 + $0x30] sm:$0xff] %v1008
        %1043 = vst [vmem:[%s334 + $0x38] sm:$0xff] %v1011
        %1044 = vst [vmem:[%s334 + $0x40] sm:$0xff] %v1014
        %1045 = vst [vmem:[%s334 + $0x48] sm:$0xff] %v1017
        %1046 = vst [vmem:[%s334 + $0x50] sm:$0xff] %v1020
        %1047 = vst [vmem:[%s334 + $0x58] sm:$0xff] %v1023
        %1048 = vst [vmem:[%s334 + $0x60] sm:$0xff] %v1026
        %1049 = vst [vmem:[%s334 + $0x68] sm:$0xff] %v1029
        %1050 = vst [vmem:[%s334 + $0x70] sm:$0xff] %v1032
        %1051 = vst [vmem:[%s334 + $0x78] sm:$0xff] %v1035
        %s1052 = sand.u32 %s147, 1
        %s1053 = scalar_lea.sflag [#allocation4], %s1052
        %s1054 = sand.u32 %s147, 1
        %s1055 = smul.addr %s1054, 128
        %s1056 = scalar_lea.vmem [#allocation11], %s1055
        %s1057 = sand.u32 %s173, 1
        %s1058 = scalar_lea.sflag [#allocation13], %s1057
        %s1059 = sand.u32 %s173, 1
        %s1060 = smul.addr %s1059, 128
        %s1061 = scalar_lea.vmem [#allocation12], %s1060
        // Predicated region
        $region61: #{tpu_custom_call.1} parent=39 // pred_check
          %p1062 = pneg %p157
        $region62: #{tpu_custom_call.1} parent=39 // pred_check_branch
          %1064 = sbr.rel (%p1062) target = $region64
        $region63: #{tpu_custom_call.1} parent=39 // pred_region
          %s1065 = smul.u32 16, %s29
          %s1067 = ssub.s32 2048, 2048
          %1068 = vsyncadd %s1053, %s1067
          %s1069 = smul.addr %s1065, 128
          %s1070 = scalar_lea.hbm %s5, %s1069
          %s1071 = sshll.u32 %s1056, 4
          %s1072 = int_to_ptr.vmem [resolvable:$true] %s1071
          %1077 = dma.vmem_to_hbm [thread:$0]  %s1072, 2048, %s1070, %s1053, 128, 128, 8
        $region64: #{tpu_custom_call.1} parent=39 // pred_fallthru
          _
        // Predicated region
        $region65: #{tpu_custom_call.1} parent=39 // pred_check
          %p1078 = pneg %p183
        $region66: #{tpu_custom_call.1} parent=39 // pred_check_branch
          %1080 = sbr.rel (%p1078) target = $region68
        $region67: #{tpu_custom_call.1} parent=39 // pred_region
          %s1081 = smul.u32 16, %s29
          %s1083 = ssub.s32 2048, 2048
          %1084 = vsyncadd %s1058, %s1083
          %s1085 = smul.addr %s1081, 128
          %s1086 = scalar_lea.hbm %s6, %s1085
          %s1087 = sshll.u32 %s1061, 4
          %s1088 = int_to_ptr.vmem [resolvable:$true] %s1087
          %1093 = dma.vmem_to_hbm [thread:$0]  %s1088, 2048, %s1086, %s1058, 128, 128, 8
        $region68: #{tpu_custom_call.1} parent=39 // pred_fallthru
          _
      $region40: #{tpu_custom_call.1} parent=5 // pred_fallthru
        _
      %p1094 = scmp.le.s32.totalorder 2, %s24
      // Predicated region
      $region69: #{tpu_custom_call.1} parent=5 // pred_check
        %p1095 = pneg %p1094
      $region70: #{tpu_custom_call.1} parent=5 // pred_check_branch
        %1097 = sbr.rel (%p1095) target = $region72
      $region71: #{tpu_custom_call.1} parent=5 // pred_region
        %s1098 = ssub.s32 %s24, 2
        // Predicated region
        $region73: #{tpu_custom_call.1} parent=71 // pred_check
          %p1099 = pneg %p163
        $region74: #{tpu_custom_call.1} parent=71 // pred_check_branch
          %1101 = sbr.rel (%p1099) target = $region76
        $region75: #{tpu_custom_call.1} parent=71 // pred_region
          %s1102 = sand.u32 %s148, 1
          %s1103 = scalar_lea.sflag [#allocation4], %s1102
          %s1104 = sand.u32 %s148, 1
          %s1105 = smul.addr %s1104, 128
          %s1106 = scalar_lea.vmem [#allocation11], %s1105
          %1107 = dma.done %s1103, 2048
        $region76: #{tpu_custom_call.1} parent=71 // pred_fallthru
          _
        // Predicated region
        $region77: #{tpu_custom_call.1} parent=71 // pred_check
          %p1108 = pneg %p189
        $region78: #{tpu_custom_call.1} parent=71 // pred_check_branch
          %1110 = sbr.rel (%p1108) target = $region80
        $region79: #{tpu_custom_call.1} parent=71 // pred_region
          %s1111 = sand.u32 %s174, 1
          %s1112 = scalar_lea.sflag [#allocation13], %s1111
          %s1113 = sand.u32 %s174, 1
          %s1114 = smul.addr %s1113, 128
          %s1115 = scalar_lea.vmem [#allocation12], %s1114
          %1116 = dma.done %s1112, 2048
        $region80: #{tpu_custom_call.1} parent=71 // pred_fallthru
          _
      $region72: #{tpu_custom_call.1} parent=5 // pred_fallthru
        _
    $region6: #{tpu_custom_call.1} parent=1 // loop_footer
      %s28 = sadd.s32 1, %s24
    $region7: #{tpu_custom_call.1} parent=1 // loop_footer_branch
      %23 = sbr.rel target = $region3
    $region8: #{tpu_custom_call.1} parent=1 // loop_exit
      _
    %1117 = vsyncpa [#allocation3], 1
    %s1118 = scalar_lea.sflag [#allocation3], 1
    %1119 = vsyncpa %s1118, 1
    %1120 = vsyncpa [#allocation6], 1
    %1121 = vsyncpa [#allocation9], 1
    %1122 = vsyncpa [#allocation4], 1
    %s1123 = scalar_lea.sflag [#allocation4], 1
    %1124 = vsyncpa %s1123, 1
    %1125 = vsyncpa [#allocation13], 1
    %s1126 = scalar_lea.sflag [#allocation13], 1
    %1127 = vsyncpa %s1126, 1

</llo_original>
